<compile_context>
chip_gen: v7x
topology: tpu7x:2x2x1
jax: 0.10.0
libtpu: 0.0.40
codegen_flags: <defaults>
</compile_context>

<pallas_src>
import math
from functools import partial

import jax
import jax.numpy as jnp
from jax.experimental import pallas as pl
from jax.experimental.pallas import tpu as pltpu

# ---- module hyper-parameters (from MPCL.__init__ defaults) -----------------
NUM_CLASS = 5
TEMPERATURE = 0.07
BASE_TEMPERATURE = 0.07
MARGIN = 0.5
COS_M = math.cos(MARGIN)
SIN_M = math.sin(MARGIN)
TH = math.cos(math.pi - MARGIN)
MM = math.sin(math.pi - MARGIN) * MARGIN
EASY_MARGIN = False


def _round_up(x, n):
    return ((x + n - 1) // n) * n


def _cdiv(a, b):
    return -(-a // b)


def _tensorcores_per_chip():
    """v7x has 2 TensorCores per chip; v5e/v6e have 1."""
    try:
        kind = jax.devices()[0].device_kind.lower()
    except Exception:
        return 1
    return 2 if "v7" in kind else 1


# ---------------------------- Pallas kernel ---------------------------------
def _mpcl_kernel(x_ref, c_ref, lab_ref, out_ref, *, m_total, tm, need_mask,
                 multi_tile):
    """Per-tile (C, tm) orientation: cosine -> margin logits -> log-softmax.

    x_ref   : (tm, D)  f32  anchors tile (contiguous HBM slab)
    c_ref   : (C, D)   f32  class centers (resident)
    lab_ref : (1, tm)  i32  labels row
    out_ref : (1, tm)  f32  per-anchor loss (padded columns zeroed on last tile)
    """
    x = x_ref[...]                      # (tm, D)
    centers = c_ref[...]                # (C, D)
    labels = lab_ref[...]               # (1, tm)

    # cosine similarities on the MXU; contract the D axis of both operands so
    # the result stays lane-dense over anchors: (C, tm).
    cosine = jax.lax.dot_general(
        centers, x,
        dimension_numbers=(((1,), (1,)), ((), ())),
        preferred_element_type=jnp.float32)                       # (C, tm)

    inv_t = 1.0 / TEMPERATURE
    logits = cosine * inv_t
    logits = logits - jnp.max(logits, axis=0, keepdims=True)

    sine = jnp.sqrt(jnp.clip(1.0 - cosine * cosine, 0.0001, 1.0))
    phi = cosine * COS_M - sine * SIN_M
    if EASY_MARGIN:
        phi = jnp.where(cosine > 0.0, phi, cosine)
    else:
        phi = jnp.where(cosine > TH, phi, cosine - MM)

    phi_logits = phi * inv_t
    phi_logits = phi_logits - jnp.max(phi_logits, axis=0, keepdims=True)

    num_c = cosine.shape[0]
    cls = jax.lax.broadcasted_iota(jnp.int32, (num_c, tm), 0)
    one_hot = labels == cls                                       # (C, tm) bool

    combined = jnp.where(one_hot, phi_logits, logits)             # (C, tm)
    denom = jnp.sum(jnp.exp(combined), axis=0, keepdims=True) + 0.0001
    log_prob = combined - jnp.log(denom)                          # (C, tm)

    mean_log_prob_pos = jnp.sum(jnp.where(one_hot, log_prob, 0.0),
                                axis=0, keepdims=True)            # (1, tm)
    loss_row = -(TEMPERATURE / BASE_TEMPERATURE) * mean_log_prob_pos

    if not need_mask:
        # No padded columns exist: plain unmasked lane-dense store everywhere.
        out_ref[...] = loss_row
    else:
        def _masked_store():
            i = pl.program_id(0)
            col = jax.lax.broadcasted_iota(jnp.int32, (1, tm), 1) + i * tm
            out_ref[...] = jnp.where(col < m_total, loss_row, 0.0)

        if not multi_tile:
            _masked_store()
        else:
            last = pl.num_programs(0) - 1
            pl.when(pl.program_id(0) == last)(_masked_store)

            @pl.when(pl.program_id(0) != last)
            def _():
                out_ref[...] = loss_row


# ------------------------------ wrapper --------------------------------------
@jax.jit
def mpcl_loss(features, labels, class_center_feas):
    """features: [bsz, n_views, D]; labels: [bsz] int; class_center_feas: [D, C]."""
    n, v, d = features.shape
    assert v == 1, "MPCL mask broadcasting in the reference requires n_views == 1"
    assert labels.shape[0] == n, "num of labels does not match num of features"
    m = n * v

    # torch.cat(torch.unbind(features, dim=1), dim=0) with n_views == 1 is just
    # a squeeze: no data movement.
    anchors = features[:, 0, :].astype(jnp.float32)               # (m, D)
    centers = class_center_feas.T.astype(jnp.float32)             # (C, D), tiny
    c = centers.shape[0]

    # ---- tile selection -----------------------------------------------------
    # VMEM guardrail: anchors tile double-buffered = 2 * tm * D * 4 B; at D=32,
    # tm=8192 that is 2 MiB (+ ~128 KiB labels/out), far below even v5e's 16 MiB
    # scoped-VMEM default.  Re-derive if D or dtype ever grows.
    tm_cap = 8192
    m_pad0 = _round_up(m, 128)
    ntiles = _cdiv(m_pad0, tm_cap)
    if _tensorcores_per_chip() >= 2 and m_pad0 >= 4096:
        # v7x: give the "parallel" axis an even number of steps so both
        # TensorCores get work.  Tiny problems stay a single step.
        ntiles = max(ntiles, 2)
        if ntiles % 2:
            ntiles += 1
    tm = _round_up(_cdiv(m_pad0, ntiles), 128)
    grid_n = _cdiv(m_pad0, tm)
    m_pad = grid_n * tm

    if m_pad > m:
        anchors = jnp.pad(anchors, ((0, m_pad - m), (0, 0)))      # zero rows
    labels_row = labels.reshape(-1).astype(jnp.int32)
    if m_pad > m:
        labels_row = jnp.pad(labels_row, (0, m_pad - m), constant_values=-1)
    labels_row = labels_row.reshape(1, m_pad)                     # (1, M_pad)

    need_mask = m_pad != m

    cost = pl.CostEstimate(
        flops=2 * c * d * m_pad + 12 * c * m_pad,
        transcendentals=(2 * c + 1) * m_pad,
        bytes_accessed=4 * (m_pad * d + 2 * m_pad + c * d))

    out = pl.pallas_call(
        partial(_mpcl_kernel, m_total=m, tm=tm, need_mask=need_mask,
                multi_tile=grid_n > 1),
        out_shape=jax.ShapeDtypeStruct((1, m_pad), jnp.float32),
        grid_spec=pltpu.PrefetchScalarGridSpec(
            num_scalar_prefetch=0,
            grid=(grid_n,),
            in_specs=[
                pl.BlockSpec((tm, d), lambda i: (i, 0)),   # anchors (M_pad, D)
                pl.BlockSpec((c, d), lambda i: (0, 0)),    # class centers (whole)
                pl.BlockSpec((1, tm), lambda i: (0, i)),   # labels row tile
            ],
            out_specs=pl.BlockSpec((1, tm), lambda i: (0, i)),
        ),
        compiler_params=pltpu.CompilerParams(
            dimension_semantics=("parallel",)),
        cost_estimate=cost,
    )(anchors, centers, labels_row)

    # Tiny epilogue (sum + divide) fuses into one small XLA kernel under jit.
    return jnp.sum(out) / m


# ----------------------- pure-JAX reference (torch semantics) ----------------
def mpcl_ref(features, labels, class_center_feas):
    n, v, d = features.shape
    anchor = jnp.concatenate([features[:, j, :] for j in range(v)], axis=0)
    cosine = anchor @ class_center_feas
    logits = cosine / TEMPERATURE
    logits = logits - jnp.max(logits, axis=1, keepdims=True)
    sine = jnp.sqrt(jnp.clip(1.0 - cosine ** 2, 0.0001, 1.0))
    phi = cosine * COS_M - sine * SIN_M
    if EASY_MARGIN:
        phi = jnp.where(cosine > 0.0, phi, cosine)
    else:
        phi = jnp.where(cosine > TH, phi, cosine - MM)
    phi_logits = phi / TEMPERATURE
    phi_logits = phi_logits - jnp.max(phi_logits, axis=1, keepdims=True)
    mask = (labels.reshape(-1, 1) == jnp.arange(NUM_CLASS).reshape(1, -1))
    mask = jnp.tile(mask.astype(jnp.float32), (v, v))
    tag_1 = 1.0 - mask
    tag_2 = mask
    exp_logits = jnp.exp(logits * tag_1 + phi_logits * tag_2)
    phi_logits = logits * tag_1 + phi_logits * tag_2
    log_prob = phi_logits - jnp.log(exp_logits.sum(1, keepdims=True) + 0.0001)
    mean_log_prob_pos = (mask * log_prob).sum(1)
    loss = -(TEMPERATURE / BASE_TEMPERATURE) * mean_log_prob_pos
    return loss.reshape(v, n).mean()


# ------------------------------- main ----------------------------------------
if __name__ == "__main__":
    key = jax.random.PRNGKey(0)
    k_feat, k_cent, k_lab = jax.random.split(key, 3)

    BSZ, N_VIEWS, FEAT_DIM, C = 256, 1, 32, NUM_CLASS

    features = jax.random.normal(k_feat, (BSZ, N_VIEWS, FEAT_DIM), jnp.float32)
    features = features / (jnp.linalg.norm(features, axis=-1, keepdims=True) + 1e-6)

    class_center_feas = jax.random.normal(k_cent, (FEAT_DIM, C), jnp.float32)
    class_center_feas = class_center_feas / (
        jnp.linalg.norm(class_center_feas, axis=0, keepdims=True) + 1e-6)

    labels = jax.random.randint(k_lab, (BSZ,), 0, C, jnp.int32)

    loss = mpcl_loss(features, labels, class_center_feas)
    loss = jax.block_until_ready(loss)

    ref = jax.block_until_ready(mpcl_ref(features, labels, class_center_feas))

    assert jnp.isfinite(loss), "kernel produced non-finite loss"
    assert jnp.allclose(loss, ref, rtol=1e-3, atol=5e-3), (
        f"mismatch: kernel={float(loss)} ref={float(ref)}")

    print("KERNEL_OK")
</pallas_src>

<mosaic_0001>
module attributes {stable_mosaic.version = 11 : i64} {
  func.func @_mpcl_kernel(%arg0: i32, %arg1: memref<256x32xf32, #tpu.memory_space<vmem>>, %arg2: memref<5x32xf32, #tpu.memory_space<vmem>>, %arg3: memref<1x256xi32, #tpu.memory_space<vmem>>, %arg4: memref<1x256xf32, #tpu.memory_space<vmem>>) attributes {dimension_semantics = [#tpu.dimension_semantics<parallel>], iteration_bounds = array<i64: 1>, scalar_prefetch = 0 : i64, scratch_operands = 0 : i64, tpu.core_type = #tpu.core_type<tc>, window_params = [{transform_indices = @transform_0, window_bounds = array<i64: 256, 32>}, {pipeline_mode = #tpu.pipeline_mode<synchronous>, transform_indices = @transform_1, window_bounds = array<i64: 5, 32>}, {transform_indices = @transform_2, window_bounds = array<i64: 1, 256>}, {transform_indices = @transform_3, window_bounds = array<i64: 1, 256>}]} {
    %c0 = arith.constant 0 : index
    %c0_0 = arith.constant 0 : index
    %0 = vector.load %arg1[%c0, %c0_0] : memref<256x32xf32, #tpu.memory_space<vmem>>, vector<256x32xf32>
    %c0_1 = arith.constant 0 : index
    %c0_2 = arith.constant 0 : index
    %1 = vector.load %arg2[%c0_1, %c0_2] : memref<5x32xf32, #tpu.memory_space<vmem>>, vector<5x32xf32>
    %c0_3 = arith.constant 0 : index
    %c0_4 = arith.constant 0 : index
    %2 = vector.load %arg3[%c0_3, %c0_4] : memref<1x256xi32, #tpu.memory_space<vmem>>, vector<1x256xi32>
    %cst = arith.constant dense<0.000000e+00> : vector<5x256xf32>
    %3 = tpu.matmul %1, %0, %cst {dimension_numbers = #tpu.dot_dimension_numbers<[1], [1], [0], [0], [0, 0, 1, 0], [], []>} : vector<5x32xf32>, vector<256x32xf32>, vector<5x256xf32> -> vector<5x256xf32>
    %cst_5 = arith.constant 14.2857141 : f32
    %4 = vector.broadcast %cst_5 : f32 to vector<5x256xf32>
    %5 = arith.mulf %3, %4 : vector<5x256xf32>
    %cst_6 = arith.constant dense<0xFF800000> : vector<256xf32>
    %6 = vector.multi_reduction <maximumf>, %5, %cst_6 [0] : vector<5x256xf32> to vector<256xf32>
    %7 = vector.shape_cast %6 : vector<256xf32> to vector<1x256xf32>
    %8 = vector.broadcast %7 : vector<1x256xf32> to vector<5x256xf32>
    %9 = arith.subf %5, %8 : vector<5x256xf32>
    %10 = arith.mulf %3, %3 : vector<5x256xf32>
    %cst_7 = arith.constant 1.000000e+00 : f32
    %11 = vector.broadcast %cst_7 : f32 to vector<5x256xf32>
    %12 = arith.subf %11, %10 : vector<5x256xf32>
    %cst_8 = arith.constant 9.99999974E-5 : f32
    %cst_9 = arith.constant 1.000000e+00 : f32
    %13 = vector.broadcast %cst_8 : f32 to vector<5x256xf32>
    %14 = arith.maximumf %13, %12 : vector<5x256xf32>
    %15 = vector.broadcast %cst_9 : f32 to vector<5x256xf32>
    %16 = arith.minimumf %15, %14 : vector<5x256xf32>
    %17 = math.sqrt %16 : vector<5x256xf32>
    %cst_10 = arith.constant 0.87758255 : f32
    %18 = vector.broadcast %cst_10 : f32 to vector<5x256xf32>
    %19 = arith.mulf %3, %18 : vector<5x256xf32>
    %cst_11 = arith.constant 0.47942555 : f32
    %20 = vector.broadcast %cst_11 : f32 to vector<5x256xf32>
    %21 = arith.mulf %17, %20 : vector<5x256xf32>
    %22 = arith.subf %19, %21 : vector<5x256xf32>
    %cst_12 = arith.constant -0.87758255 : f32
    %23 = vector.broadcast %cst_12 : f32 to vector<5x256xf32>
    %24 = arith.cmpf ogt, %3, %23 : vector<5x256xf32>
    %cst_13 = arith.constant 0.239712775 : f32
    %25 = vector.broadcast %cst_13 : f32 to vector<5x256xf32>
    %26 = arith.subf %3, %25 : vector<5x256xf32>
    %27 = arith.select %24, %22, %26 : vector<5x256xi1>, vector<5x256xf32>
    %cst_14 = arith.constant 14.2857141 : f32
    %28 = vector.broadcast %cst_14 : f32 to vector<5x256xf32>
    %29 = arith.mulf %27, %28 : vector<5x256xf32>
    %cst_15 = arith.constant dense<0xFF800000> : vector<256xf32>
    %30 = vector.multi_reduction <maximumf>, %29, %cst_15 [0] : vector<5x256xf32> to vector<256xf32>
    %31 = vector.shape_cast %30 : vector<256xf32> to vector<1x256xf32>
    %32 = vector.broadcast %31 : vector<1x256xf32> to vector<5x256xf32>
    %33 = arith.subf %29, %32 : vector<5x256xf32>
    %34 = tpu.iota {dimensions = array<i32: 0>} : vector<5x256xi32>
    %35 = vector.broadcast %2 : vector<1x256xi32> to vector<5x256xi32>
    %36 = arith.cmpi eq, %35, %34 : vector<5x256xi32>
    %37 = arith.select %36, %33, %9 : vector<5x256xi1>, vector<5x256xf32>
    %38 = math.exp %37 : vector<5x256xf32>
    %cst_16 = arith.constant dense<0.000000e+00> : vector<256xf32>
    %39 = vector.multi_reduction <add>, %38, %cst_16 [0] : vector<5x256xf32> to vector<256xf32>
    %40 = vector.shape_cast %39 : vector<256xf32> to vector<1x256xf32>
    %cst_17 = arith.constant 9.99999974E-5 : f32
    %41 = vector.broadcast %cst_17 : f32 to vector<1x256xf32>
    %42 = arith.addf %40, %41 : vector<1x256xf32>
    %43 = math.log %42 : vector<1x256xf32>
    %44 = vector.broadcast %43 : vector<1x256xf32> to vector<5x256xf32>
    %45 = arith.subf %37, %44 : vector<5x256xf32>
    %cst_18 = arith.constant 0.000000e+00 : f32
    %46 = vector.broadcast %cst_18 : f32 to vector<5x256xf32>
    %47 = arith.select %36, %45, %46 : vector<5x256xi1>, vector<5x256xf32>
    %cst_19 = arith.constant dense<0.000000e+00> : vector<256xf32>
    %48 = vector.multi_reduction <add>, %47, %cst_19 [0] : vector<5x256xf32> to vector<256xf32>
    %49 = vector.shape_cast %48 : vector<256xf32> to vector<1x256xf32>
    %cst_20 = arith.constant -1.000000e+00 : f32
    %50 = vector.broadcast %cst_20 : f32 to vector<1x256xf32>
    %51 = arith.mulf %50, %49 : vector<1x256xf32>
    %c0_21 = arith.constant 0 : index
    %c0_22 = arith.constant 0 : index
    %52 = vector.load %arg4[%c0_21, %c0_22] : memref<1x256xf32, #tpu.memory_space<vmem>>, vector<1x256xf32>
    tpu.vector_store %arg4[%c0_21, %c0_22], %51 {strides = array<i32>} : memref<1x256xf32, #tpu.memory_space<vmem>>, vector<1x256xf32>,
    return
  }
  func.func @transform_0(%arg0: i32) -> (i32, i32) {
    %c0_i32 = arith.constant 0 : i32
    %c0_i32_0 = arith.constant 0 : i32
    return %arg0, %c0_i32 : i32, i32
  }
  func.func @transform_1(%arg0: i32) -> (i32, i32) {
    %c0_i32 = arith.constant 0 : i32
    %c0_i32_0 = arith.constant 0 : i32
    %c0_i32_1 = arith.constant 0 : i32
    return %c0_i32, %c0_i32_0 : i32, i32
  }
  func.func @transform_2(%arg0: i32) -> (i32, i32) {
    %c0_i32 = arith.constant 0 : i32
    %c0_i32_0 = arith.constant 0 : i32
    return %c0_i32, %arg0 : i32, i32
  }
  func.func @transform_3(%arg0: i32) -> (i32, i32) {
    %c0_i32 = arith.constant 0 : i32
    %c0_i32_0 = arith.constant 0 : i32
    return %c0_i32, %arg0 : i32, i32
  }
}

</mosaic_0001>

<llo_original>
// kernel: mpcl_loss.1
$region0: #{mpcl_loss.1}
  #allocation0 [shape = 'u32[]', space=smem, size = 0x4, offset = 0x4, fixed_abs, tag = 'smem constant byte address 0x4 - core index']
  #allocation1 [shape = 'u32[144,128]{1,0:T(1,128)}', space=vmem, size = 0x12000, scoped, tag = 'internal scratch']
  %s0 = inlined_call_operand.vmem [shape: f32[256,32], index: 0, kind: input, shape index: {}]
  %s1 = inlined_call_operand.vmem [shape: f32[5,32], index: 1, kind: input, shape index: {}]
  %s2 = inlined_call_operand.vmem [shape: s32[1,256], index: 2, kind: input, shape index: {}]
  %s3 = inlined_call_operand.vmem [shape: f32[1,256], index: 3, kind: output, shape index: {}]
  %s4 = sld [smem:[#allocation0]]
  $region22: #{mpcl_loss.1} parent=0
    _
  %s6 = ssub.s32 1, %s4
  %s7 = scalar_select 0, %s6, %s4
  // Predicated region
  $region2: #{mpcl_loss.1} parent=0 // pred_check
    _
  $region3: #{mpcl_loss.1} parent=0 // pred_check_branch
    %9 = sbr.rel (0) target = $region5
  $region4: #{mpcl_loss.1} parent=0 // pred_region
    _
  $region5: #{mpcl_loss.1} parent=0 // pred_fallthru
    _
  // Predicated region
  $region6: #{mpcl_loss.1} parent=0 // pred_check
    _
  $region7: #{mpcl_loss.1} parent=0 // pred_check_branch
    %11 = sbr.rel (0) target = $region9
  $region8: #{mpcl_loss.1} parent=0 // pred_region
    _
  $region9: #{mpcl_loss.1} parent=0 // pred_fallthru
    _
  // Predicated region
  $region10: #{mpcl_loss.1} parent=0 // pred_check
    _
  $region11: #{mpcl_loss.1} parent=0 // pred_check_branch
    %13 = sbr.rel (0) target = $region13
  $region12: #{mpcl_loss.1} parent=0 // pred_region
    _
  $region13: #{mpcl_loss.1} parent=0 // pred_fallthru
    _
  %v14 = vld [vmem:[%s0] sm:$0xff]
  %v15 = vld [vmem:[%s0 + $0x8] sm:$0xff]
  %v16 = vld [vmem:[%s0 + $0x10] sm:$0xff]
  %v17 = vld [vmem:[%s0 + $0x18] sm:$0xff]
  %v18 = vld [vmem:[%s0 + $0x20] sm:$0xff]
  %v19 = vld [vmem:[%s0 + $0x28] sm:$0xff]
  %v20 = vld [vmem:[%s0 + $0x30] sm:$0xff]
  %v21 = vld [vmem:[%s0 + $0x38] sm:$0xff]
  %v22 = vld [vmem:[%s0 + $0x40] sm:$0xff]
  %v23 = vld [vmem:[%s0 + $0x48] sm:$0xff]
  %v24 = vld [vmem:[%s0 + $0x50] sm:$0xff]
  %v25 = vld [vmem:[%s0 + $0x58] sm:$0xff]
  %v26 = vld [vmem:[%s0 + $0x60] sm:$0xff]
  %v27 = vld [vmem:[%s0 + $0x68] sm:$0xff]
  %v28 = vld [vmem:[%s0 + $0x70] sm:$0xff]
  %v29 = vld [vmem:[%s0 + $0x78] sm:$0xff]
  %v30 = vld [vmem:[%s0 + $0x80] sm:$0xff]
  %v31 = vld [vmem:[%s0 + $0x88] sm:$0xff]
  %v32 = vld [vmem:[%s0 + $0x90] sm:$0xff]
  %v33 = vld [vmem:[%s0 + $0x98] sm:$0xff]
  %v34 = vld [vmem:[%s0 + $0xa0] sm:$0xff]
  %v35 = vld [vmem:[%s0 + $0xa8] sm:$0xff]
  %v36 = vld [vmem:[%s0 + $0xb0] sm:$0xff]
  %v37 = vld [vmem:[%s0 + $0xb8] sm:$0xff]
  %v38 = vld [vmem:[%s0 + $0xc0] sm:$0xff]
  %v39 = vld [vmem:[%s0 + $0xc8] sm:$0xff]
  %v40 = vld [vmem:[%s0 + $0xd0] sm:$0xff]
  %v41 = vld [vmem:[%s0 + $0xd8] sm:$0xff]
  %v42 = vld [vmem:[%s0 + $0xe0] sm:$0xff]
  %v43 = vld [vmem:[%s0 + $0xe8] sm:$0xff]
  %v44 = vld [vmem:[%s0 + $0xf0] sm:$0xff]
  %v45 = vld [vmem:[%s0 + $0xf8] sm:$0xff]
  %v46 = vld [vmem:[%s1] sm:$0x1f]
  %v47 = vld [vmem:[%s2] sm:$0x3]
  %vm48 = vcmask 261120
  %v50 = vsel %vm48, %v46, 0
  %v53 = vsel %vm48, %v14, 0
  %v56 = vsel %vm48, %v15, 0
  %v59 = vsel %vm48, %v16, 0
  %v62 = vsel %vm48, %v17, 0
  %v65 = vsel %vm48, %v18, 0
  %v68 = vsel %vm48, %v19, 0
  %v71 = vsel %vm48, %v20, 0
  %v74 = vsel %vm48, %v21, 0
  %v77 = vsel %vm48, %v22, 0
  %v80 = vsel %vm48, %v23, 0
  %v83 = vsel %vm48, %v24, 0
  %v86 = vsel %vm48, %v25, 0
  %v89 = vsel %vm48, %v26, 0
  %v92 = vsel %vm48, %v27, 0
  %v95 = vsel %vm48, %v28, 0
  %v98 = vsel %vm48, %v29, 0
  %v101 = vsel %vm48, %v30, 0
  %v104 = vsel %vm48, %v31, 0
  %v107 = vsel %vm48, %v32, 0
  %v110 = vsel %vm48, %v33, 0
  %v113 = vsel %vm48, %v34, 0
  %v116 = vsel %vm48, %v35, 0
  %v119 = vsel %vm48, %v36, 0
  %v122 = vsel %vm48, %v37, 0
  %v125 = vsel %vm48, %v38, 0
  %v128 = vsel %vm48, %v39, 0
  %v131 = vsel %vm48, %v40, 0
  %v134 = vsel %vm48, %v41, 0
  %v137 = vsel %vm48, %v42, 0
  %v140 = vsel %vm48, %v43, 0
  %v143 = vsel %vm48, %v44, 0
  %v146 = vsel %vm48, %v45, 0
  %148 = vmatprep.subr.mxu0 0.0
  %149 = vmatpush1.xpose.msra.mxu0 %v53
  %150 = vmatprep.subr.mxu0 0.0
  %151 = vmatpush1.xpose.msra.mxu0 %v56
  %152 = vmatprep.subr.mxu0 0.0
  %153 = vmatpush1.xpose.msra.mxu0 %v59
  %154 = vmatprep.subr.mxu0 0.0
  %155 = vmatpush1.xpose.msra.mxu0 %v62
  %156 = vmatprep.subr.mxu0 0.0
  %157 = vmatpush1.xpose.msra.mxu0 %v65
  %158 = vmatprep.subr.mxu0 0.0
  %159 = vmatpush1.xpose.msra.mxu0 %v68
  %160 = vmatprep.subr.mxu0 0.0
  %161 = vmatpush1.xpose.msra.mxu0 %v71
  %162 = vmatprep.subr.mxu0 0.0
  %163 = vmatpush1.xpose.msra.mxu0 %v74
  %164 = vmatprep.subr.mxu0 0.0
  %165 = vmatpush1.xpose.msra.mxu0 %v77
  %166 = vmatprep.subr.mxu0 0.0
  %167 = vmatpush1.xpose.msra.mxu0 %v80
  %168 = vmatprep.subr.mxu0 0.0
  %169 = vmatpush1.xpose.msra.mxu0 %v83
  %170 = vmatprep.subr.mxu0 0.0
  %171 = vmatpush1.xpose.msra.mxu0 %v86
  %172 = vmatprep.subr.mxu0 0.0
  %173 = vmatpush1.xpose.msra.mxu0 %v89
  %174 = vmatprep.subr.mxu0 0.0
  %175 = vmatpush1.xpose.msra.mxu0 %v92
  %176 = vmatprep.subr.mxu0 0.0
  %177 = vmatpush1.xpose.msra.mxu0 %v95
  %178 = vmatprep.subr.mxu0 0.0
  %179 = vmatpush1.xpose.msra.mxu0 %v98
  %180 = vmatprep.subr.mxu0 0.0
  %181 = vmatpush1.xpose.msra.mxu0 %v101
  %182 = vmatprep.subr.mxu0 0.0
  %183 = vmatpush1.xpose.msra.mxu0 %v104
  %184 = vmatprep.subr.mxu0 0.0
  %185 = vmatpush1.xpose.msra.mxu0 %v107
  %186 = vmatprep.subr.mxu0 0.0
  %187 = vmatpush1.xpose.msra.mxu0 %v110
  %188 = vmatprep.subr.mxu0 0.0
  %189 = vmatpush1.xpose.msra.mxu0 %v113
  %190 = vmatprep.subr.mxu0 0.0
  %191 = vmatpush1.xpose.msra.mxu0 %v116
  %192 = vmatprep.subr.mxu0 0.0
  %193 = vmatpush1.xpose.msra.mxu0 %v119
  %194 = vmatprep.subr.mxu0 0.0
  %195 = vmatpush1.xpose.msra.mxu0 %v122
  %196 = vmatprep.subr.mxu0 0.0
  %197 = vmatpush1.xpose.msra.mxu0 %v125
  %198 = vmatprep.subr.mxu0 0.0
  %199 = vmatpush1.xpose.msra.mxu0 %v128
  %200 = vmatprep.subr.mxu0 0.0
  %201 = vmatpush1.xpose.msra.mxu0 %v131
  %202 = vmatprep.subr.mxu0 0.0
  %203 = vmatpush1.xpose.msra.mxu0 %v134
  %204 = vmatprep.subr.mxu0 0.0
  %205 = vmatpush1.xpose.msra.mxu0 %v137
  %206 = vmatprep.subr.mxu0 0.0
  %207 = vmatpush1.xpose.msra.mxu0 %v140
  %208 = vmatprep.subr.mxu0 0.0
  %209 = vmatpush1.xpose.msra.mxu0 %v143
  %210 = vmatprep.subr.mxu0 0.0
  %211 = vmatpush1.xpose.msra.mxu0 %v146
  %212 = vmatprep.mubr.f32.mxu0 0.0
  %213 = vmatmul.mubr.f32.gmra.mrb[0].mxu0 %v50
  %v214 = vpop.f32.mrb[0].mxu0
  %v215 = vadd.f32 0.0, %v214
  %v216 = vpop.f32.mrb[0].mxu0
  %v217 = vadd.f32 0.0, %v216
  %218 = vdwg.mxu0
  %v219 = vmul.f32 %v215, 14.285714
  %v220 = vmul.f32 %v217, 14.285714
  %vm221 = vcmask 1044480
  %v222 = vsel %vm221, %v219, -inf
  %v223 = vrot.slane %v222, 4
  %v224 = vmax.f32 %v222, %v223
  %v225 = vrot.slane %v224, 2
  %v226 = vmax.f32 %v224, %v225
  %v227 = vrot.slane %v226, 1
  %v228 = vmax.f32 %v226, %v227
  %v229 = vsel %vm221, %v220, -inf
  %v230 = vrot.slane %v229, 4
  %v231 = vmax.f32 %v229, %v230
  %v232 = vrot.slane %v231, 2
  %v233 = vmax.f32 %v231, %v232
  %v234 = vrot.slane %v233, 1
  %v235 = vmax.f32 %v233, %v234
  %v236 = vsub.f32 %v219, %v228
  %v237 = vsub.f32 %v220, %v235
  %v238 = vmul.f32 %v215, %v215
  %v239 = vmul.f32 %v217, %v217
  %v240 = vsub.f32 1.0, %v238
  %v241 = vsub.f32 1.0, %v239
  %v242 = vmax.f32 %v240, 0.0001
  %v243 = vmax.f32 %v241, 0.0001
  %v244 = vmin.f32 %v242, 1.0
  %v245 = vmin.f32 %v243, 1.0
  %v246 = vrsqrt.pop %v244
  %v247 = vmul.f32 %v244, %v246
  %vm248 = vcmp.eq.f32.partialorder %v244, inf
  %v249 = vsel %vm248, %v244, %v247
  %vm250 = vcmp.eq.f32.partialorder %v244, 0.0
  %v251 = vand.u32 %v244, 2147483648
  %v252 = vsel %vm250, %v251, %v249
  %v253 = vrsqrt.pop %v245
  %v254 = vmul.f32 %v245, %v253
  %vm255 = vcmp.eq.f32.partialorder %v245, inf
  %v256 = vsel %vm255, %v245, %v254
  %vm257 = vcmp.eq.f32.partialorder %v245, 0.0
  %v258 = vand.u32 %v245, 2147483648
  %v259 = vsel %vm257, %v258, %v256
  %v260 = vmul.f32 %v215, 0.87758255
  %v261 = vmul.f32 %v217, 0.87758255
  %v262 = vmul.f32 %v252, 0.47942555
  %v263 = vmul.f32 %v259, 0.47942555
  %v264 = vsub.f32 %v260, %v262
  %v265 = vsub.f32 %v261, %v263
  %vm266 = vcmp.gt.f32.partialorder %v215, -0.87758255
  %vm267 = vcmp.gt.f32.partialorder %v217, -0.87758255
  %v268 = vsub.f32 %v215, 0.23971277
  %v269 = vsub.f32 %v217, 0.23971277
  %v270 = vsel %vm266, %v264, %v268
  %v271 = vsel %vm267, %v265, %v269
  %v272 = vmul.f32 %v270, 14.285714
  %v273 = vmul.f32 %v271, 14.285714
  %v274 = vsel %vm221, %v272, -inf
  %v275 = vrot.slane %v274, 4
  %v276 = vmax.f32 %v274, %v275
  %v277 = vrot.slane %v276, 2
  %v278 = vmax.f32 %v276, %v277
  %v279 = vrot.slane %v278, 1
  %v280 = vmax.f32 %v278, %v279
  %v281 = vsel %vm221, %v273, -inf
  %v282 = vrot.slane %v281, 4
  %v283 = vmax.f32 %v281, %v282
  %v284 = vrot.slane %v283, 2
  %v285 = vmax.f32 %v283, %v284
  %v286 = vrot.slane %v285, 1
  %v287 = vmax.f32 %v285, %v286
  %v288 = vsub.f32 %v272, %v280
  %v289 = vsub.f32 %v273, %v287
  %v290 = vlaneseq
  %v291 = vshrl.u32 %v290, 7
  %v292 = vlaneseq
  %v293 = vshrl.u32 %v292, 7
  %v294 = vsub.s32 0, %v293
  %v295 = vrot.slane %v47, %v294
  %v296 = vlaneseq
  %v297 = vshrl.u32 %v296, 7
  %v298 = vsub.s32 1, %v297
  %v299 = vrot.slane %v47, %v298
  %vm300 = vcmp.eq.s32.totalorder %v295, %v291
  %vm301 = vcmp.eq.s32.totalorder %v299, %v291
  %v302 = vsel %vm300, %v288, %v236
  %v303 = vsel %vm301, %v289, %v237
  %v304 = vmul.f32 %v302, 1.442695
  %v305 = vpow.pop %v304
  %v306 = vmul.f32 %v303, 1.442695
  %v307 = vpow.pop %v306
  %v308 = vsel %vm221, %v305, 0.0
  %v309 = vrot.slane %v308, 4
  %v310 = vadd.f32 %v308, %v309
  %v311 = vrot.slane %v310, 2
  %v312 = vadd.f32 %v310, %v311
  %v313 = vrot.slane %v312, 1
  %v314 = vadd.f32 %v312, %v313
  %v315 = vsel %vm221, %v307, 0.0
  %v316 = vrot.slane %v315, 4
  %v317 = vadd.f32 %v315, %v316
  %v318 = vrot.slane %v317, 2
  %v319 = vadd.f32 %v317, %v318
  %v320 = vrot.slane %v319, 1
  %v321 = vadd.f32 %v319, %v320
  %v322 = vadd.f32 %v314, 0.0001
  %v323 = vadd.f32 %v321, 0.0001
  %v324 = vlog2.pop %v322
  %v325 = vmul.f32 %v324, 0.6931472
  %v326 = vlog2.pop %v323
  %v327 = vmul.f32 %v326, 0.6931472
  %v328 = vsub.f32 %v302, %v325
  %v329 = vsub.f32 %v303, %v327
  %v330 = vsel %vm300, %v328, 0.0
  %v331 = vsel %vm301, %v329, 0.0
  %v332 = vsel %vm221, %v330, 0.0
  %v333 = vrot.slane %v332, 4
  %v334 = vadd.f32 %v332, %v333
  %v335 = vrot.slane %v334, 2
  %v336 = vadd.f32 %v334, %v335
  %v337 = vrot.slane %v336, 1
  %v338 = vadd.f32 %v336, %v337
  %v339 = vsel %vm221, %v331, 0.0
  %v340 = vrot.slane %v339, 4
  %v341 = vadd.f32 %v339, %v340
  %v342 = vrot.slane %v341, 2
  %v343 = vadd.f32 %v341, %v342
  %v344 = vrot.slane %v343, 1
  %v345 = vadd.f32 %v343, %v344
  %v346 = vmul.f32 %v338, -1.0
  %v347 = vmul.f32 %v345, -1.0
  %v350 = vcombine.low %v346, %v347
  %v352 = vunpack.c.l.s4 1966171168
  %v353 = vunpack.c.0.s8 %v352
  %v354 = vlaneseq
  %v355 = vshrl.u32 %v354, 7
  %v356 = vsub.s32 %v353, %v355
  %v357 = vrot.slane %v350, %v356
  %v359 = vunpack.c.l.s4 1966171168
  %v360 = vunpack.c.0.s8 %v359
  %v361 = vlaneseq
  %v362 = vshrl.u32 %v361, 7
  %v363 = vsub.s32 %v360, %v362
  %v364 = vrot.slane %v357, %v363
  %v366 = vlaneseq
  %vm367 = vcmp.ge.s32.totalorder %v366, 0
  %vm368 = vcmp.lt.s32.totalorder %v366, 256
  %vm369 = vmand %vm367, %vm368
  %370 = vst.msk [vmem:[%s3] sm:$0x3] %vm369, %v364
  // Predicated region
  $region14: #{mpcl_loss.1} parent=0 // pred_check
    _
  $region15: #{mpcl_loss.1} parent=0 // pred_check_branch
    %372 = sbr.rel (0) target = $region17
  $region16: #{mpcl_loss.1} parent=0 // pred_region
    _
  $region17: #{mpcl_loss.1} parent=0 // pred_fallthru
    _
  // Predicated region
  $region18: #{mpcl_loss.1} parent=0 // pred_check
    _
  $region19: #{mpcl_loss.1} parent=0 // pred_check_branch
    %374 = sbr.rel (0) target = $region21
  $region20: #{mpcl_loss.1} parent=0 // pred_region
    _
  $region21: #{mpcl_loss.1} parent=0 // pred_fallthru
    _

</llo_original>
